<compile_context>
chip_gen: v6e
topology: v6e:2x2x1
jax: 0.10.0
libtpu: 0.0.40
codegen_flags: <defaults>
</compile_context>

<pallas_src>
import jax
import jax.numpy as jnp
from jax import lax
from jax.experimental import pallas as pl
from jax.experimental.pallas import tpu as pltpu


_EPS = 1e-12  # matches torch.nn.functional.normalize default eps


def _round_up(v, m):
    return ((v + m - 1) // m) * m


def relative_block_kernel(x_ref, rhsx_ref, a2_ref, we_ref, b_ref, o_ref):
    """One grid step: a (TN, D) row-tile of points against ALL (lane-padded) anchors.

    x_ref   : (TN, D)          points tile (input dtype)
    rhsx_ref: (D, Ap + OUTp)   [ anchors.T | Mc ], Mc = normalized_anchors.T @ W_cos.T
    a2_ref  : (1, Ap)          ||anchor||^2 per (padded) anchor, f32
    we_ref  : (Ap, OUTp)       Linear weight for the euclidean projection
    b_ref   : (1, OUTp)        Linear bias, f32
    o_ref   : (TN, OUTp)       output tile
    """
    Ap = a2_ref.shape[-1]

    x_f32 = x_ref[...].astype(jnp.float32)
    x2 = jnp.sum(x_f32 * x_f32, axis=-1, keepdims=True)             # (TN, 1)
    inv_xn = lax.rsqrt(jnp.maximum(x2, _EPS * _EPS))                # 1/max(||x||,eps), EUP slot

    # ONE shared MXU matmul against [anchors.T | Mc]:
    #   xm[:, :Ap] = x @ anchors.T   (euclidean branch)
    #   xm[:, Ap:] = x @ Mc          (cosine branch, folded through the Linear weight)
    xm = jnp.dot(x_ref[...].astype(rhsx_ref.dtype), rhsx_ref[...],
                 preferred_element_type=jnp.float32)                # (TN, Ap + OUTp)
    xa = xm[:, :Ap]                                                 # lane-aligned slices (128)
    out_cos = xm[:, Ap:] * inv_xn                                   # (TN, OUTp)

    # Euclidean distances via the ||x||^2 + ||a||^2 - 2 x.a expansion (clamped at 0).
    euc = jnp.sqrt(jnp.maximum(x2 + a2_ref[...] - 2.0 * xa, 0.0))   # (TN, Ap)

    out = (out_cos
           + jnp.dot(euc.astype(we_ref.dtype), we_ref[...],
                     preferred_element_type=jnp.float32)
           + b_ref[...])
    o_ref[...] = out.astype(o_ref.dtype)


def relative_block(x, anchors, w, b, *, tile_n=512, matmul_in_bf16=True):
    """x: (N, D), anchors: (A, D), w: (OUT, 2A) [torch Linear layout], b: (OUT,)."""
    N, D = x.shape
    A, Da = anchors.shape
    assert Da == D
    OUT = w.shape[0]
    assert w.shape == (OUT, 2 * A)

    f32 = jnp.float32
    a = anchors.astype(f32)
    a2 = jnp.sum(a * a, axis=-1, keepdims=True)                    # (A, 1)
    a_n = a * lax.rsqrt(jnp.maximum(a2, _EPS * _EPS))              # F.normalize(anchors)

    # Cosine branch folded through the Linear weight (loop-invariant, done once here).
    w_cos_t = jnp.transpose(w[:, :A]).astype(f32)                  # (A, OUT)
    w_euc_t = jnp.transpose(w[:, A:]).astype(f32)                  # (A, OUT)
    mc = a_n.T @ w_cos_t                                           # (D, OUT)

    # Lane-pad anchor and output axes to multiples of 128 -> lane-dense MXU rhs and
    # unmasked output stores.  Padded anchors get zero weight rows (contribute nothing);
    # padded output columns are sliced off below.  D is NOT padded (streamed operand).
    Ap = _round_up(A, 128)
    OUTp = _round_up(OUT, 128)

    at_p = jnp.zeros((D, Ap), f32).at[:, :A].set(a.T)
    mc_p = jnp.zeros((D, OUTp), f32).at[:, :OUT].set(mc)
    a2_p = jnp.zeros((1, Ap), f32).at[:, :A].set(a2.T)
    we_p = jnp.zeros((Ap, OUTp), f32).at[:A, :OUT].set(w_euc_t)
    b_p = jnp.zeros((1, OUTp), f32).at[:, :OUT].set(b.astype(f32).reshape(1, OUT))

    w_dtype = jnp.bfloat16 if matmul_in_bf16 else f32
    rhs_x = jnp.concatenate([at_p, mc_p], axis=1).astype(w_dtype)  # (D, Ap + OUTp)
    we_p = we_p.astype(w_dtype)

    # Row tiling: no padding copy of x.  Tile rounded to the dtype sublane multiple; if the
    # tile would not evenly cover N, the last block is partial and Pallas masks its stores.
    sub = {4: 8, 2: 16, 1: 32}.get(jnp.dtype(x.dtype).itemsize, 8)
    if N <= max(tile_n, sub):
        if N >= 4 * sub:
            # Split into >= 2 blocks so both TensorCores get work on v7x megacore.
            tile = _round_up(pl.cdiv(N, 2), sub)
        else:
            tile = N          # single full-dim block: no 8-row divisibility required
    else:
        tile = max(sub, (tile_n // sub) * sub)
    grid = (pl.cdiv(N, tile),)

    # Explicit scoped-VMEM budget (double-buffered streams + resident operands + temps).
    x_bytes = jnp.dtype(x.dtype).itemsize
    w_bytes = jnp.dtype(w_dtype).itemsize
    resident = (D * (Ap + OUTp) + Ap * OUTp) * w_bytes + (Ap + OUTp) * 4
    streamed = tile * (D + OUTp) * x_bytes
    temps = tile * (Ap + OUTp) * 4 + 2 * tile * Ap * 4 + tile * OUTp * 4
    vmem_limit = int(min(max(2 * (resident + streamed) + temps, 32 * 2**20), 64 * 2**20))

    out = pl.pallas_call(
        relative_block_kernel,
        out_shape=jax.ShapeDtypeStruct((N, OUTp), x.dtype),
        grid_spec=pltpu.PrefetchScalarGridSpec(
            num_scalar_prefetch=0,
            grid=grid,
            in_specs=[
                pl.BlockSpec((tile, D), lambda i: (i, 0)),           # x row tile (streamed)
                # Grid-invariant operands (constant index_map -> fetched once, reused).
                pl.BlockSpec((D, Ap + OUTp), lambda i: (0, 0)),      # [anchors.T | Mc]
                pl.BlockSpec((1, Ap), lambda i: (0, 0)),             # ||anchor||^2
                pl.BlockSpec((Ap, OUTp), lambda i: (0, 0)),          # W_euc
                pl.BlockSpec((1, OUTp), lambda i: (0, 0)),           # bias
            ],
            out_specs=pl.BlockSpec((tile, OUTp), lambda i: (i, 0)),
        ),
        compiler_params=pltpu.CompilerParams(
            dimension_semantics=("parallel",),
            vmem_limit_bytes=vmem_limit,
        ),
    )(x, rhs_x, a2_p, we_p, b_p)

    return out if OUTp == OUT else out[:, :OUT]


def relative_block_ref(x, anchors, w, b):
    """Pure-JAX reference mirroring the PyTorch forward (Cosine + Euclidean + Linear)."""
    eps = 1e-12
    xn = x / jnp.maximum(jnp.linalg.norm(x, axis=-1, keepdims=True), eps)
    an = anchors / jnp.maximum(jnp.linalg.norm(anchors, axis=-1, keepdims=True), eps)
    cos = xn @ an.T
    x2 = jnp.sum(x * x, -1, keepdims=True)
    a2 = jnp.sum(anchors * anchors, -1, keepdims=True).T
    euc = jnp.sqrt(jnp.maximum(x2 + a2 - 2.0 * (x @ anchors.T), 0.0))
    rel = jnp.concatenate([cos, euc], axis=-1)
    return rel @ w.T + b


if __name__ == "__main__":
    # Small, deterministic shapes consistent with the module:
    #   points x: (N=8, D=32), anchors: (A=16, D=32)
    #   projection_names = ['Cosine', 'Euclidean']  -> rel_x: (8, 32)
    #   aggregation_module = Linear(2*A=32 -> OUT=32)
    N, D, A, OUT = 8, 32, 16, 32
    key = jax.random.PRNGKey(0)
    kx, ka, kw, kb = jax.random.split(key, 4)

    x = jax.random.normal(kx, (N, D), dtype=jnp.float32)
    anchors = jax.random.normal(ka, (A, D), dtype=jnp.float32)
    w = jax.random.normal(kw, (OUT, 2 * A), dtype=jnp.float32) * 0.05   # torch Linear layout
    b = jax.random.normal(kb, (OUT,), dtype=jnp.float32) * 0.01

    ref = relative_block_ref(x, anchors, w, b)

    # Strict f32 MXU path (tight tolerance).
    out_f32 = jax.block_until_ready(relative_block(x, anchors, w, b, matmul_in_bf16=False))
    assert out_f32.shape == (N, OUT)
    assert jnp.allclose(out_f32, ref, atol=1e-4, rtol=1e-4), "f32 mismatch vs reference"

    # Default path: bf16 MXU operands, f32 accumulation (looser tolerance).
    out_def = jax.block_until_ready(relative_block(x, anchors, w, b))
    assert jnp.allclose(out_def, ref, atol=5e-2, rtol=5e-2), "bf16 mismatch vs reference"

    # Ragged N: multi-step grid + masked partial last block, no x padding copy.
    N2 = 300
    x2 = jax.random.normal(jax.random.PRNGKey(1), (N2, D), dtype=jnp.float32)
    ref2 = relative_block_ref(x2, anchors, w, b)
    out2 = jax.block_until_ready(
        relative_block(x2, anchors, w, b, tile_n=128, matmul_in_bf16=False))
    assert out2.shape == (N2, OUT)
    assert jnp.allclose(out2, ref2, atol=1e-4, rtol=1e-4), "tiled f32 mismatch vs reference"

    # Default tiling on ragged N (two row blocks, bf16 operands).
    out3 = jax.block_until_ready(relative_block(x2, anchors, w, b))
    assert jnp.allclose(out3, ref2, atol=5e-2, rtol=5e-2), "tiled bf16 mismatch vs reference"

    print("KERNEL_OK")
</pallas_src>

<mosaic_0001>
module attributes {stable_mosaic.version = 11 : i64} {
  func.func @relative_block_kernel(%arg0: i32, %arg1: memref<8x32xf32, #tpu.memory_space<vmem>>, %arg2: memref<32x256xf32, #tpu.memory_space<vmem>>, %arg3: memref<1x128xf32, #tpu.memory_space<vmem>>, %arg4: memref<128x128xf32, #tpu.memory_space<vmem>>, %arg5: memref<1x128xf32, #tpu.memory_space<vmem>>, %arg6: memref<8x128xf32, #tpu.memory_space<vmem>>) attributes {dimension_semantics = [#tpu.dimension_semantics<parallel>], iteration_bounds = array<i64: 1>, scalar_prefetch = 0 : i64, scratch_operands = 0 : i64, tpu.core_type = #tpu.core_type<tc>, window_params = [{transform_indices = @transform_0, window_bounds = array<i64: 8, 32>}, {pipeline_mode = #tpu.pipeline_mode<synchronous>, transform_indices = @transform_1, window_bounds = array<i64: 32, 256>}, {pipeline_mode = #tpu.pipeline_mode<synchronous>, transform_indices = @transform_2, window_bounds = array<i64: 1, 128>}, {pipeline_mode = #tpu.pipeline_mode<synchronous>, transform_indices = @transform_3, window_bounds = array<i64: 128, 128>}, {pipeline_mode = #tpu.pipeline_mode<synchronous>, transform_indices = @transform_4, window_bounds = array<i64: 1, 128>}, {transform_indices = @transform_5, window_bounds = array<i64: 8, 128>}]} {
    %c0 = arith.constant 0 : index
    %c0_0 = arith.constant 0 : index
    %0 = vector.load %arg1[%c0, %c0_0] : memref<8x32xf32, #tpu.memory_space<vmem>>, vector<8x32xf32>
    %1 = arith.mulf %0, %0 : vector<8x32xf32>
    %cst = arith.constant dense<0.000000e+00> : vector<8xf32>
    %2 = vector.multi_reduction <add>, %1, %cst [1] : vector<8x32xf32> to vector<8xf32>
    %3 = vector.shape_cast %2 : vector<8xf32> to vector<8x1xf32>
    %cst_1 = arith.constant 1.000000e-24 : f32
    %4 = vector.broadcast %cst_1 : f32 to vector<8x1xf32>
    %5 = arith.maximumf %3, %4 : vector<8x1xf32>
    %6 = math.rsqrt %5 : vector<8x1xf32>
    %c0_2 = arith.constant 0 : index
    %c0_3 = arith.constant 0 : index
    %7 = vector.load %arg1[%c0_2, %c0_3] : memref<8x32xf32, #tpu.memory_space<vmem>>, vector<8x32xf32>
    %c0_4 = arith.constant 0 : index
    %c0_5 = arith.constant 0 : index
    %8 = vector.load %arg2[%c0_4, %c0_5] : memref<32x256xf32, #tpu.memory_space<vmem>>, vector<32x256xf32>
    %cst_6 = arith.constant dense<0.000000e+00> : vector<8x256xf32>
    %9 = tpu.matmul %7, %8, %cst_6 {dimension_numbers = #tpu.dot_dimension_numbers<[1], [0], [0], [1], [0, 0, 1, 1], [], []>} : vector<8x32xf32>, vector<32x256xf32>, vector<8x256xf32> -> vector<8x256xf32>
    %10 = vector.extract_strided_slice %9 {offsets = [0, 0], sizes = [8, 128], strides = [1, 1]} : vector<8x256xf32> to vector<8x128xf32>
    %11 = vector.extract_strided_slice %9 {offsets = [0, 128], sizes = [8, 128], strides = [1, 1]} : vector<8x256xf32> to vector<8x128xf32>
    %12 = vector.broadcast %6 : vector<8x1xf32> to vector<8x128xf32>
    %13 = arith.mulf %11, %12 : vector<8x128xf32>
    %c0_7 = arith.constant 0 : index
    %c0_8 = arith.constant 0 : index
    %14 = vector.load %arg3[%c0_7, %c0_8] : memref<1x128xf32, #tpu.memory_space<vmem>>, vector<1x128xf32>
    %15 = vector.broadcast %3 : vector<8x1xf32> to vector<8x128xf32>
    %16 = vector.broadcast %14 : vector<1x128xf32> to vector<8x128xf32>
    %17 = arith.addf %15, %16 : vector<8x128xf32>
    %cst_9 = arith.constant 2.000000e+00 : f32
    %18 = vector.broadcast %cst_9 : f32 to vector<8x128xf32>
    %19 = arith.mulf %18, %10 : vector<8x128xf32>
    %20 = arith.subf %17, %19 : vector<8x128xf32>
    %cst_10 = arith.constant 0.000000e+00 : f32
    %21 = vector.broadcast %cst_10 : f32 to vector<8x128xf32>
    %22 = arith.maximumf %20, %21 : vector<8x128xf32>
    %23 = math.sqrt %22 : vector<8x128xf32>
    %c0_11 = arith.constant 0 : index
    %c0_12 = arith.constant 0 : index
    %24 = vector.load %arg4[%c0_11, %c0_12] : memref<128x128xf32, #tpu.memory_space<vmem>>, vector<128x128xf32>
    %cst_13 = arith.constant dense<0.000000e+00> : vector<8x128xf32>
    %25 = tpu.matmul %23, %24, %cst_13 {dimension_numbers = #tpu.dot_dimension_numbers<[1], [0], [0], [1], [0, 0, 1, 1], [], []>} : vector<8x128xf32>, vector<128x128xf32>, vector<8x128xf32> -> vector<8x128xf32>
    %26 = arith.addf %13, %25 : vector<8x128xf32>
    %c0_14 = arith.constant 0 : index
    %c0_15 = arith.constant 0 : index
    %27 = vector.load %arg5[%c0_14, %c0_15] : memref<1x128xf32, #tpu.memory_space<vmem>>, vector<1x128xf32>
    %28 = vector.broadcast %27 : vector<1x128xf32> to vector<8x128xf32>
    %29 = arith.addf %26, %28 : vector<8x128xf32>
    %c0_16 = arith.constant 0 : index
    %c0_17 = arith.constant 0 : index
    %30 = vector.load %arg6[%c0_16, %c0_17] : memref<8x128xf32, #tpu.memory_space<vmem>>, vector<8x128xf32>
    tpu.vector_store %arg6[%c0_16, %c0_17], %29 {strides = array<i32>} : memref<8x128xf32, #tpu.memory_space<vmem>>, vector<8x128xf32>,
    return
  }
  func.func @transform_0(%arg0: i32) -> (i32, i32) {
    %c0_i32 = arith.constant 0 : i32
    %c0_i32_0 = arith.constant 0 : i32
    return %arg0, %c0_i32 : i32, i32
  }
  func.func @transform_1(%arg0: i32) -> (i32, i32) {
    %c0_i32 = arith.constant 0 : i32
    %c0_i32_0 = arith.constant 0 : i32
    %c0_i32_1 = arith.constant 0 : i32
    return %c0_i32, %c0_i32_0 : i32, i32
  }
  func.func @transform_2(%arg0: i32) -> (i32, i32) {
    %c0_i32 = arith.constant 0 : i32
    %c0_i32_0 = arith.constant 0 : i32
    %c0_i32_1 = arith.constant 0 : i32
    return %c0_i32, %c0_i32_0 : i32, i32
  }
  func.func @transform_3(%arg0: i32) -> (i32, i32) {
    %c0_i32 = arith.constant 0 : i32
    %c0_i32_0 = arith.constant 0 : i32
    %c0_i32_1 = arith.constant 0 : i32
    return %c0_i32, %c0_i32_0 : i32, i32
  }
  func.func @transform_4(%arg0: i32) -> (i32, i32) {
    %c0_i32 = arith.constant 0 : i32
    %c0_i32_0 = arith.constant 0 : i32
    %c0_i32_1 = arith.constant 0 : i32
    return %c0_i32, %c0_i32_0 : i32, i32
  }
  func.func @transform_5(%arg0: i32) -> (i32, i32) {
    %c0_i32 = arith.constant 0 : i32
    %c0_i32_0 = arith.constant 0 : i32
    return %arg0, %c0_i32 : i32, i32
  }
}

</mosaic_0001>

<llo_original>
// kernel: tpu_custom_call.1
$region0: #{tpu_custom_call.1}
  #allocation0 [shape = 'u32[]', space=smem, size = 0x4, offset = 0x4, fixed_abs, tag = 'smem constant byte address 0x4 - core index']
  #allocation1 [shape = 'u32[144,128]{1,0:T(1,128)}', space=vmem, size = 0x12000, scoped, tag = 'internal scratch']
  %s0 = inlined_call_operand.hbm [shape: f32[8,32], index: 0, kind: input, shape index: {}]
  %s1 = inlined_call_operand.hbm [shape: f32[32,256], index: 1, kind: input, shape index: {}]
  %s2 = inlined_call_operand.vmem [shape: f32[1,128], index: 2, kind: input, shape index: {}]
  %s3 = inlined_call_operand.hbm [shape: f32[128,128], index: 3, kind: input, shape index: {}]
  %s4 = inlined_call_operand.vmem [shape: f32[1,128], index: 4, kind: input, shape index: {}]
  %s5 = inlined_call_operand.hbm [shape: f32[8,128], index: 5, kind: output, shape index: {}]
  %s6 = sld [smem:[#allocation0]]
  $region42: #{tpu_custom_call.1} parent=0
    _
  %s8 = ssub.s32 1, %s6
  %s9 = scalar_select 0, %s8, %s6
  $region1: #{tpu_custom_call.1} parent=0
    #allocation2 [shape = 'u8[4096]{0}', space=vmem, size = 0x1000, scoped, tag = 'input window, operand 0, single buffered']
    #allocation3 [shape = 's32[1]{0}', space=sflag, size = 0x4, scoped, tag = 'scoped memory for tpu_custom_call.1']
    #allocation4 [shape = 's32[1]{0}', space=sflag, size = 0x4, scoped, tag = 'scoped memory for tpu_custom_call.1']
    #allocation5 [shape = 'u8[32768]{0}', space=vmem, size = 0x8000, scoped, tag = 'input window, operand 1, single buffered']
    #allocation6 [shape = 's32[1]{0}', space=sflag, size = 0x4, scoped, tag = 'scoped memory for tpu_custom_call.1']
    #allocation7 [shape = 'u8[65536]{0}', space=vmem, size = 0x10000, scoped, tag = 'input window, operand 3, single buffered']
    #allocation8 [shape = 'u8[4096]{0}', space=vmem, size = 0x1000, scoped, tag = 'output window, operand 0, single buffered']
    %10 = vsyncpa [#allocation3], 0
    %11 = vsyncpa [#allocation6], 0
    %12 = vsyncpa [#allocation4], 0
    // Predicated region
    $region2: #{tpu_custom_call.1} parent=1 // pred_check
      _
    $region3: #{tpu_custom_call.1} parent=1 // pred_check_branch
      %14 = sbr.rel (0) target = $region5
    $region4: #{tpu_custom_call.1} parent=1 // pred_region
      %s16 = ssub.s32 128, 128
      %17 = vsyncadd [#allocation3], %s16
      %s19 = sshll.u32 [#allocation2], 4
      %s20 = int_to_ptr.vmem [resolvable:$true] %s19
      %22 = dma.hbm_to_vmem [thread:$0]  %s0, 128, %s20, [#allocation3]
    $region5: #{tpu_custom_call.1} parent=1 // pred_fallthru
      _
    // Predicated region
    $region6: #{tpu_custom_call.1} parent=1 // pred_check
      _
    $region7: #{tpu_custom_call.1} parent=1 // pred_check_branch
      %24 = sbr.rel (0) target = $region9
    $region8: #{tpu_custom_call.1} parent=1 // pred_region
      %s26 = ssub.s32 1024, 1024
      %27 = vsyncadd [#allocation6], %s26
      %s28 = sshll.u32 [#allocation5], 4
      %s29 = int_to_ptr.vmem [resolvable:$true] %s28
      %34 = dma.hbm_to_vmem [thread:$0]  %s1, 1024, %s29, [#allocation6], 256, 256, 16
    $region9: #{tpu_custom_call.1} parent=1 // pred_fallthru
      _
    // Predicated region
    $region10: #{tpu_custom_call.1} parent=1 // pred_check
      _
    $region11: #{tpu_custom_call.1} parent=1 // pred_check_branch
      %36 = sbr.rel (0) target = $region13
    $region12: #{tpu_custom_call.1} parent=1 // pred_region
      _
    $region13: #{tpu_custom_call.1} parent=1 // pred_fallthru
      _
    // Predicated region
    $region14: #{tpu_custom_call.1} parent=1 // pred_check
      _
    $region15: #{tpu_custom_call.1} parent=1 // pred_check_branch
      %38 = sbr.rel (0) target = $region17
    $region16: #{tpu_custom_call.1} parent=1 // pred_region
      %s40 = ssub.s32 2048, 2048
      %41 = vsyncadd [#allocation6], %s40
      %s42 = sshll.u32 [#allocation7], 4
      %s43 = int_to_ptr.vmem [resolvable:$true] %s42
      %48 = dma.hbm_to_vmem [thread:$0]  %s3, 2048, %s43, [#allocation6], 128, 128, 8
    $region17: #{tpu_custom_call.1} parent=1 // pred_fallthru
      _
    // Predicated region
    $region18: #{tpu_custom_call.1} parent=1 // pred_check
      _
    $region19: #{tpu_custom_call.1} parent=1 // pred_check_branch
      %50 = sbr.rel (0) target = $region21
    $region20: #{tpu_custom_call.1} parent=1 // pred_region
      _
    $region21: #{tpu_custom_call.1} parent=1 // pred_fallthru
      _
    // Predicated region
    $region22: #{tpu_custom_call.1} parent=1 // pred_check
      _
    $region23: #{tpu_custom_call.1} parent=1 // pred_check_branch
      %52 = sbr.rel (0) target = $region25
    $region24: #{tpu_custom_call.1} parent=1 // pred_region
      %53 = dma.done [#allocation3], 128
    $region25: #{tpu_custom_call.1} parent=1 // pred_fallthru
      _
    // Predicated region
    $region26: #{tpu_custom_call.1} parent=1 // pred_check
      _
    $region27: #{tpu_custom_call.1} parent=1 // pred_check_branch
      %55 = sbr.rel (0) target = $region29
    $region28: #{tpu_custom_call.1} parent=1 // pred_region
      %56 = dma.done [#allocation6], 1024
    $region29: #{tpu_custom_call.1} parent=1 // pred_fallthru
      _
    // Predicated region
    $region30: #{tpu_custom_call.1} parent=1 // pred_check
      _
    $region31: #{tpu_custom_call.1} parent=1 // pred_check_branch
      %58 = sbr.rel (0) target = $region33
    $region32: #{tpu_custom_call.1} parent=1 // pred_region
      %59 = dma.done [#allocation6], 2048
    $region33: #{tpu_custom_call.1} parent=1 // pred_fallthru
      _
    %v60 = vld [vmem:[#allocation2] sm:$0xff]
    %v61 = vmul.f32 %v60, %v60
    %vm62 = vcmask 261120
    %v63 = vsel %vm62, %v61, 0.0
    %64 = vadd.xlane.f32.xlu0 %v63
    %v65 = vpop.xlane.xlu0 %64
    %v66 = vmax.f32 %v65, 1e-24
    %v67 = vrsqrt.pop %v66
    %v68 = vld [vmem:[#allocation5] sm:$0xff]
    %v69 = vld [vmem:[#allocation5 + $0x8] sm:$0xff]
    %v70 = vld [vmem:[#allocation5 + $0x10] sm:$0xff]
    %v71 = vld [vmem:[#allocation5 + $0x18] sm:$0xff]
    %v72 = vld [vmem:[#allocation5 + $0x20] sm:$0xff]
    %v73 = vld [vmem:[#allocation5 + $0x28] sm:$0xff]
    %v74 = vld [vmem:[#allocation5 + $0x30] sm:$0xff]
    %v75 = vld [vmem:[#allocation5 + $0x38] sm:$0xff]
    %v77 = vsel %vm62, %v60, 0
    %79 = vmatprep.subr.mxu0 0.0
    %80 = vmatpush1.msra.mxu0 0.0
    %81 = vmatprep.subr.mxu0 0.0
    %82 = vmatpush1.msra.mxu0 0.0
    %83 = vmatprep.subr.mxu0 0.0
    %84 = vmatpush1.msra.mxu0 0.0
    %85 = vmatprep.subr.mxu0 0.0
    %86 = vmatpush1.msra.mxu0 0.0
    %87 = vmatprep.subr.mxu0 0.0
    %88 = vmatpush1.msra.mxu0 0.0
    %89 = vmatprep.subr.mxu0 0.0
    %90 = vmatpush1.msra.mxu0 0.0
    %91 = vmatprep.subr.mxu0 0.0
    %92 = vmatpush1.msra.mxu0 0.0
    %93 = vmatprep.subr.mxu0 0.0
    %94 = vmatpush1.msra.mxu0 0.0
    %95 = vmatprep.subr.mxu0 0.0
    %96 = vmatpush1.msra.mxu0 0.0
    %97 = vmatprep.subr.mxu0 0.0
    %98 = vmatpush1.msra.mxu0 0.0
    %99 = vmatprep.subr.mxu0 0.0
    %100 = vmatpush1.msra.mxu0 0.0
    %101 = vmatprep.subr.mxu0 0.0
    %102 = vmatpush1.msra.mxu0 0.0
    %103 = vmatprep.subr.mxu0 %v75
    %104 = vmatpush1.msra.mxu0 %v74
    %105 = vmatprep.subr.mxu0 %v73
    %106 = vmatpush1.msra.mxu0 %v72
    %107 = vmatprep.subr.mxu0 %v71
    %108 = vmatpush1.msra.mxu0 %v70
    %109 = vmatprep.subr.mxu0 %v69
    %110 = vmatpush1.msra.mxu0 %v68
    %111 = vmatprep.subr.mxu0 0.0
    %112 = vmatpush2.msra.mxu0 0.0
    %113 = vmatprep.subr.mxu0 0.0
    %114 = vmatpush2.msra.mxu0 0.0
    %115 = vmatprep.subr.mxu0 0.0
    %116 = vmatpush2.msra.mxu0 0.0
    %117 = vmatprep.subr.mxu0 0.0
    %118 = vmatpush2.msra.mxu0 0.0
    %119 = vmatprep.subr.mxu0 0.0
    %120 = vmatpush2.msra.mxu0 0.0
    %121 = vmatprep.subr.mxu0 0.0
    %122 = vmatpush2.msra.mxu0 0.0
    %123 = vmatprep.subr.mxu0 0.0
    %124 = vmatpush2.msra.mxu0 0.0
    %125 = vmatprep.subr.mxu0 0.0
    %126 = vmatpush2.msra.mxu0 0.0
    %127 = vmatprep.subr.mxu0 0.0
    %128 = vmatpush2.msra.mxu0 0.0
    %129 = vmatprep.subr.mxu0 0.0
    %130 = vmatpush2.msra.mxu0 0.0
    %131 = vmatprep.subr.mxu0 0.0
    %132 = vmatpush2.msra.mxu0 0.0
    %133 = vmatprep.subr.mxu0 0.0
    %134 = vmatpush2.msra.mxu0 0.0
    %135 = vmatprep.subr.mxu0 0.0
    %136 = vmatpush2.msra.mxu0 0.0
    %137 = vmatprep.subr.mxu0 0.0
    %138 = vmatpush2.msra.mxu0 0.0
    %139 = vmatprep.subr.mxu0 0.0
    %140 = vmatpush2.msra.mxu0 0.0
    %141 = vmatprep.subr.mxu0 0.0
    %142 = vmatpush2.msra.mxu0 0.0
    %143 = vmatprep.mubr.f32.mxu0 0.0
    %144 = vmatmul.mubr.f32.gmra.mxu0 %v77
    %v145 = vpop.f32.mrf.mxu0
    %v146 = vadd.f32 0.0, %v145
    %v147 = vpop.f32.mrf.mxu0
    %v148 = vadd.f32 0.0, %v147
    %149 = vdwg.mxu0
    %v150 = vmul.f32 %v148, %v67
    %v151 = vld [vmem:[%s2] sm:$0x1]
    %v153 = vlaneseq
    %v154 = vshrl.u32 %v153, 7
    %v155 = vsub.s32 0, %v154
    %v156 = vrot.slane %v151, %v155
    %v158 = vadd.f32 %v65, %v156
    %v159 = vmul.f32 %v146, 2.0
    %v160 = vsub.f32 %v158, %v159
    %v161 = vmax.f32 %v160, 0.0
    %v162 = vrsqrt.pop %v161
    %v163 = vmul.f32 %v161, %v162
    %vm164 = vcmp.eq.f32.partialorder %v161, inf
    %v165 = vsel %vm164, %v161, %v163
    %vm166 = vcmp.eq.f32.partialorder %v161, 0.0
    %v167 = vand.u32 %v161, 2147483648
    %v168 = vsel %vm166, %v167, %v165
    %v169 = vld [vmem:[#allocation7] sm:$0xff]
    %v170 = vld [vmem:[#allocation7 + $0x8] sm:$0xff]
    %v171 = vld [vmem:[#allocation7 + $0x10] sm:$0xff]
    %v172 = vld [vmem:[#allocation7 + $0x18] sm:$0xff]
    %v173 = vld [vmem:[#allocation7 + $0x20] sm:$0xff]
    %v174 = vld [vmem:[#allocation7 + $0x28] sm:$0xff]
    %v175 = vld [vmem:[#allocation7 + $0x30] sm:$0xff]
    %v176 = vld [vmem:[#allocation7 + $0x38] sm:$0xff]
    %v177 = vld [vmem:[#allocation7 + $0x40] sm:$0xff]
    %v178 = vld [vmem:[#allocation7 + $0x48] sm:$0xff]
    %v179 = vld [vmem:[#allocation7 + $0x50] sm:$0xff]
    %v180 = vld [vmem:[#allocation7 + $0x58] sm:$0xff]
    %v181 = vld [vmem:[#allocation7 + $0x60] sm:$0xff]
    %v182 = vld [vmem:[#allocation7 + $0x68] sm:$0xff]
    %v183 = vld [vmem:[#allocation7 + $0x70] sm:$0xff]
    %v184 = vld [vmem:[#allocation7 + $0x78] sm:$0xff]
    %185 = vmatprep.subr.mxu0 0.0
    %186 = vmatpush1.msra.mxu0 %v184
    %187 = vmatprep.subr.mxu0 0.0
    %188 = vmatpush1.msra.mxu0 %v183
    %189 = vmatprep.subr.mxu0 0.0
    %190 = vmatpush1.msra.mxu0 %v182
    %191 = vmatprep.subr.mxu0 0.0
    %192 = vmatpush1.msra.mxu0 %v181
    %193 = vmatprep.subr.mxu0 0.0
    %194 = vmatpush1.msra.mxu0 %v180
    %195 = vmatprep.subr.mxu0 0.0
    %196 = vmatpush1.msra.mxu0 %v179
    %197 = vmatprep.subr.mxu0 0.0
    %198 = vmatpush1.msra.mxu0 %v178
    %199 = vmatprep.subr.mxu0 0.0
    %200 = vmatpush1.msra.mxu0 %v177
    %201 = vmatprep.subr.mxu0 0.0
    %202 = vmatpush1.msra.mxu0 %v176
    %203 = vmatprep.subr.mxu0 0.0
    %204 = vmatpush1.msra.mxu0 %v175
    %205 = vmatprep.subr.mxu0 0.0
    %206 = vmatpush1.msra.mxu0 %v174
    %207 = vmatprep.subr.mxu0 0.0
    %208 = vmatpush1.msra.mxu0 %v173
    %209 = vmatprep.subr.mxu0 0.0
    %210 = vmatpush1.msra.mxu0 %v172
    %211 = vmatprep.subr.mxu0 0.0
    %212 = vmatpush1.msra.mxu0 %v171
    %213 = vmatprep.subr.mxu0 0.0
    %214 = vmatpush1.msra.mxu0 %v170
    %215 = vmatprep.subr.mxu0 0.0
    %216 = vmatpush1.msra.mxu0 %v169
    %217 = vmatprep.subr.mxu0 0.0
    %218 = vmatpush2.msra.mxu0 0.0
    %219 = vmatprep.subr.mxu0 0.0
    %220 = vmatpush2.msra.mxu0 0.0
    %221 = vmatprep.subr.mxu0 0.0
    %222 = vmatpush2.msra.mxu0 0.0
    %223 = vmatprep.subr.mxu0 0.0
    %224 = vmatpush2.msra.mxu0 0.0
    %225 = vmatprep.subr.mxu0 0.0
    %226 = vmatpush2.msra.mxu0 0.0
    %227 = vmatprep.subr.mxu0 0.0
    %228 = vmatpush2.msra.mxu0 0.0
    %229 = vmatprep.subr.mxu0 0.0
    %230 = vmatpush2.msra.mxu0 0.0
    %231 = vmatprep.subr.mxu0 0.0
    %232 = vmatpush2.msra.mxu0 0.0
    %233 = vmatprep.subr.mxu0 0.0
    %234 = vmatpush2.msra.mxu0 0.0
    %235 = vmatprep.subr.mxu0 0.0
    %236 = vmatpush2.msra.mxu0 0.0
    %237 = vmatprep.subr.mxu0 0.0
    %238 = vmatpush2.msra.mxu0 0.0
    %239 = vmatprep.subr.mxu0 0.0
    %240 = vmatpush2.msra.mxu0 0.0
    %241 = vmatprep.subr.mxu0 0.0
    %242 = vmatpush2.msra.mxu0 0.0
    %243 = vmatprep.subr.mxu0 0.0
    %244 = vmatpush2.msra.mxu0 0.0
    %245 = vmatprep.subr.mxu0 0.0
    %246 = vmatpush2.msra.mxu0 0.0
    %247 = vmatprep.subr.mxu0 0.0
    %248 = vmatpush2.msra.mxu0 0.0
    %249 = vmatprep.mubr.f32.mxu0 0.0
    %250 = vmatmul.mubr.f32.gmra.mxu0 %v168
    %v251 = vpop.f32.mrf.mxu0
    %v252 = vadd.f32 0.0, %v251
    %v253 = vpop.f32.mrf.mxu0
    %254 = vdwg.mxu0
    %v255 = vadd.f32 %v150, %v252
    %v256 = vld [vmem:[%s4] sm:$0x1]
    %v258 = vlaneseq
    %v259 = vshrl.u32 %v258, 7
    %v260 = vsub.s32 0, %v259
    %v261 = vrot.slane %v256, %v260
    %v263 = vadd.f32 %v255, %v261
    %264 = vst [vmem:[#allocation8] sm:$0xff] %v263
    // Predicated region
    $region34: #{tpu_custom_call.1} parent=1 // pred_check
      _
    $region35: #{tpu_custom_call.1} parent=1 // pred_check_branch
      %266 = sbr.rel (0) target = $region37
    $region36: #{tpu_custom_call.1} parent=1 // pred_region
      %s268 = ssub.s32 128, 128
      %269 = vsyncadd [#allocation4], %s268
      %s271 = sshll.u32 [#allocation8], 4
      %s272 = int_to_ptr.vmem [resolvable:$true] %s271
      %274 = dma.vmem_to_hbm [thread:$0]  %s272, 128, %s5, [#allocation4]
    $region37: #{tpu_custom_call.1} parent=1 // pred_fallthru
      _
    // Predicated region
    $region38: #{tpu_custom_call.1} parent=1 // pred_check
      _
    $region39: #{tpu_custom_call.1} parent=1 // pred_check_branch
      %276 = sbr.rel (0) target = $region41
    $region40: #{tpu_custom_call.1} parent=1 // pred_region
      %277 = dma.done [#allocation4], 128
    $region41: #{tpu_custom_call.1} parent=1 // pred_fallthru
      _
    %278 = vsyncpa [#allocation3], 1
    %279 = vsyncpa [#allocation6], 1
    %280 = vsyncpa [#allocation4], 1

</llo_original>
